<compile_context>
chip_gen: v5e
topology: v5e:2x2
jax: 0.10.0
libtpu: 0.0.40
codegen_flags: <defaults>
</compile_context>

<pallas_src>
import numpy as np
import jax
import jax.numpy as jnp
from jax.experimental import pallas as pl
from jax.experimental.pallas import tpu as pltpu


def _round_up(x, m):
    return ((x + m - 1) // m) * m


def _cdiv(a, b):
    return -(-a // b)


# ---------------------------------------------------------------------------
# Pallas kernels
# ---------------------------------------------------------------------------
def _linear_bias_kernel(x_ref, w_ref, b_ref, o_ref):
    # Single-shot K contraction (tk == H_in): no accumulator scratch, bias
    # fused into the only store.  x_ref:[tm,tk] w_ref:[tk,tn] b_ref:[1,tn](f32)
    o_ref[...] = (jnp.dot(x_ref[...], w_ref[...],
                          preferred_element_type=jnp.float32)
                  + b_ref[...]).astype(o_ref.dtype)


def _linear_bias_acc_kernel(x_ref, w_ref, b_ref, o_ref, acc_ref):
    # K-tiled fallback (weight K-strip too large for a single resident block).
    k = pl.program_id(2)

    @pl.when(k == 0)
    def _init():
        acc_ref[...] = jnp.zeros_like(acc_ref)

    acc_ref[...] += jnp.dot(x_ref[...], w_ref[...],
                            preferred_element_type=jnp.float32)

    @pl.when(k == pl.num_programs(2) - 1)
    def _finalize():
        o_ref[...] = (acc_ref[...] + b_ref[...]).astype(o_ref.dtype)


# ---------------------------------------------------------------------------
# VMEM budgeting and tile planning
# ---------------------------------------------------------------------------
def _vmem_plan():
    """(vmem_limit_bytes to request, double-buffered working-set budget)."""
    phys = None
    try:
        info = pltpu.get_tpu_info()
        phys = int(getattr(info, "vmem_capacity_bytes", 0)) or None
    except Exception:
        phys = None
    if phys is None:
        phys = 64 * 1024 * 1024          # conservative default: v7x per-TC VMEM
    # v5e/v6e (128 MiB) -> ~96 MiB limit; v7x (64 MiB) -> 48 MiB limit.
    vmem_limit = min(int(phys * 3 // 4), 100 * 1024 * 1024)
    budget = int(vmem_limit * 0.8)       # leave pipelining/compiler headroom
    return vmem_limit, budget


def _plan_tiles(n, hin, hout_p, x_item, w_item, out_item, budget, row_align,
                tm_hard_cap=1024):
    """Pick (tm_cap, tn, tk, use_acc).  Prefers a fully VMEM-resident weight
    (tk=hin, tn=hout_p -> zero W re-streaming, no accumulator), then smaller N
    tiles, then K tiling with an f32 accumulator.  Returns None only for
    pathological hin that needs zero-padded K."""
    n_al = _round_up(max(n, 1), row_align)

    def max_tm(tk, tn, use_acc):
        fixed = 2 * tk * tn * w_item + 2 * tn * 4            # W tile + f32 bias
        per_row = 2 * tk * x_item + 2 * tn * out_item + (tn * 4 if use_acc else 0)
        if fixed >= budget:
            return 0
        return (budget - fixed) // per_row

    tk_cands = [hin] + [t for t in (2048, 1024, 512, 256, 128)
                        if t < hin and hin % t == 0]
    tn_cands = [hout_p] + [t for t in (512, 256, 128) if t < hout_p]

    for req_tm in (min(n_al, 256), min(n_al, 128), row_align):
        for tk in tk_cands:
            for tn in tn_cands:
                use_acc = tk != hin
                mt = max_tm(tk, tn, use_acc)
                if mt < req_tm:
                    continue
                tm_cap = int(min((mt // row_align) * row_align, tm_hard_cap))
                return tm_cap, tn, tk, use_acc
    return None


def _balanced_tm(n, tm_cap, row_align):
    """Row tile that minimizes padded-tail waste, with a v7x megacore split."""
    n_al = _round_up(max(n, 1), row_align)
    cap = max(row_align, min(tm_cap, n_al))
    gm = _cdiv(n_al, cap)
    tm = _round_up(_cdiv(n_al, gm), row_align)
    # Give the "parallel" M axis >=2 blocks when there is enough work to shard
    # across v7x's two TensorCores (one extra ~0.35us grid step elsewhere).
    if gm == 1 and n_al >= 256:
        tm = _round_up(_cdiv(n_al, 2), row_align)
    return tm


# ---------------------------------------------------------------------------
# y = x @ W + b  (row-wise Linear over packed data)
# ---------------------------------------------------------------------------
def seqwise_linear(x, w, b, *, use_bf16=False, trim=True, out_dtype=None):
    """x: [N, H_in]   w: [H_in, H_out]   b: [H_out].

    trim=False returns the lane-padded [N, round_up(H_out,128)] buffer so the
    caller can fold the trim into a downstream op (sequence_wise_forward does).
    out_dtype defaults to x's dtype at call time (before any bf16 cast).
    """
    n, hin = x.shape
    hout = w.shape[1]
    if out_dtype is None:
        out_dtype = x.dtype                       # captured before any cast
    out_dtype = jnp.dtype(out_dtype)

    if use_bf16:
        # bf16 is MXU-native on v5e/v6e/v7x; accumulation stays f32.
        w = w.astype(jnp.bfloat16)
        if x.dtype != jnp.bfloat16:
            # TODO(synk): this standalone cast is one extra HBM pass over x;
            # prefer producing bf16 activations upstream and passing them in.
            x = x.astype(jnp.bfloat16)
    elif w.dtype != x.dtype:
        w = w.astype(x.dtype)

    row_align = 16 if x.dtype == jnp.bfloat16 else 8

    # Lane-dense output: pad H_out (weights/bias only — the large activation
    # tensor is never copied) up to a multiple of 128 lanes.
    hout_p = _round_up(hout, 128)
    if hout_p != hout:
        w = jnp.pad(w, ((0, 0), (0, hout_p - hout)))
        b = jnp.pad(b, (0, hout_p - hout))
    b2 = b.reshape(1, hout_p).astype(jnp.float32)

    vmem_limit, budget = _vmem_plan()
    x_item = x.dtype.itemsize
    w_item = w.dtype.itemsize
    out_item = out_dtype.itemsize

    plan = _plan_tiles(n, hin, hout_p, x_item, w_item, out_item, budget, row_align)
    if plan is None:
        # TODO(synk): pathological H_in (no 128-multiple K tile under the VMEM
        # budget) — zero-pad K.  Costs one extra HBM pass over x; essentially
        # never triggers for the hidden sizes this module is used with.
        hin_p = _round_up(hin, 512)
        x = jnp.pad(x, ((0, 0), (0, hin_p - hin)))
        w = jnp.pad(w, ((0, hin_p - hin), (0, 0)))
        hin = hin_p
        plan = _plan_tiles(n, hin, hout_p, x_item, w_item, out_item, budget,
                           row_align)
        if plan is None:
            raise ValueError("no Pallas tiling fits the VMEM budget")

    tm_cap, tn, tk, use_acc = plan
    tm = _balanced_tm(n, tm_cap, row_align)
    gm = _cdiv(n, tm)            # partial last M block is masked (writes dropped)
    gn = _cdiv(hout_p, tn)       # partial last N block is masked likewise
    gk = hin // tk               # tk divides hin by construction

    cost = pl.CostEstimate(
        flops=int(2 * n * hin * hout_p),
        transcendentals=0,
        bytes_accessed=int(n * hin * x_item + hin * hout_p * w_item
                           + n * hout_p * out_item),
    )
    cp = pltpu.CompilerParams(
        dimension_semantics=(("parallel", "parallel", "arbitrary") if use_acc
                             else ("parallel", "parallel")),
        vmem_limit_bytes=vmem_limit,
    )

    # NOTE: partial M / N blocks read out-of-bounds garbage rows / columns.
    # This is safe only because those output rows/columns are never written
    # back and nothing reduces across the M or N tile (the K contraction is
    # always exact).  Keep this invariant if the kernel is extended.
    if not use_acc:
        out = pl.pallas_call(
            _linear_bias_kernel,
            out_shape=jax.ShapeDtypeStruct((n, hout_p), out_dtype),
            grid_spec=pltpu.PrefetchScalarGridSpec(
                num_scalar_prefetch=0,
                grid=(gm, gn),
                in_specs=[
                    pl.BlockSpec((tm, tk), lambda i, j: (i, 0)),
                    pl.BlockSpec((tk, tn), lambda i, j: (0, j)),   # W resident
                    pl.BlockSpec((1, tn), lambda i, j: (0, j)),
                ],
                out_specs=pl.BlockSpec((tm, tn), lambda i, j: (i, j)),
            ),
            compiler_params=cp,
            cost_estimate=cost,
        )(x, w, b2)
    else:
        out = pl.pallas_call(
            _linear_bias_acc_kernel,
            out_shape=jax.ShapeDtypeStruct((n, hout_p), out_dtype),
            grid_spec=pltpu.PrefetchScalarGridSpec(
                num_scalar_prefetch=0,
                grid=(gm, gn, gk),
                in_specs=[
                    pl.BlockSpec((tm, tk), lambda i, j, k: (i, k)),
                    pl.BlockSpec((tk, tn), lambda i, j, k: (k, j)),
                    pl.BlockSpec((1, tn), lambda i, j, k: (0, j)),
                ],
                out_specs=pl.BlockSpec((tm, tn), lambda i, j, k: (i, j)),
                scratch_shapes=[pltpu.VMEM((tm, tn), jnp.float32)],
            ),
            compiler_params=cp,
            cost_estimate=cost,
        )(x, w, b2)

    if trim and hout_p != hout:
        # One extra output-sized HBM pass; callers that can consume the padded
        # buffer should pass trim=False and trim downstream.
        out = out[:, :hout]
    return out


# ---------------------------------------------------------------------------
# Var_to_packed: static index bookkeeping (host side), minimal data movement
# ---------------------------------------------------------------------------
def _packed_permutation(batch_sizes_t, batch_seq_len):
    """Per-output-row source index into y, validity mask, output batch_sizes."""
    bst = np.asarray(batch_sizes_t, dtype=np.int64)
    lens = np.asarray(batch_seq_len, dtype=np.int64)
    t_in = len(bst)
    offsets = np.concatenate([[0], np.cumsum(bst)[:-1]])
    t_out = int(lens.max())
    bs_out = np.array([int((lens > t).sum()) for t in range(t_out)], dtype=np.int64)
    src, valid = [], []
    for t in range(t_out):
        for bb in range(int(bs_out[t])):
            if t < t_in and bb < int(bst[t]):
                src.append(int(offsets[t] + bb))
                valid.append(True)
            else:
                src.append(0)
                valid.append(False)
    return np.asarray(src, np.int32), np.asarray(valid, bool), bs_out


def var_to_packed(y, batch_sizes_t, batch_seq_len, hout=None):
    """Port of Var_to_packed.forward (unpack -> zero-pad -> stack -> transpose
    -> pack_padded_sequence(batch_first=True)), reduced to at most one fused
    gather + mask.  `hout` folds the lane-padding trim into the same gather.
    """
    # TODO(synk): fusing this row permutation into the matmul kernel via scalar
    # prefetch would force 1-row (pl.Element) blocks and starve the MXU, so the
    # permutation stays host-side bookkeeping + a single XLA gather.
    src, valid, bs_out = _packed_permutation(batch_sizes_t, batch_seq_len)
    n_out = src.shape[0]
    needs_col_trim = hout is not None and hout != y.shape[1]

    identity = (n_out == y.shape[0]                 # correctness fix (review)
                and bool(valid.all())
                and np.array_equal(src, np.arange(n_out)))
    if identity:
        packed = y[:, :hout] if needs_col_trim else y
    else:
        gathered = jnp.take(y, jnp.asarray(src), axis=0)
        if needs_col_trim:
            gathered = gathered[:, :hout]
        if bool(valid.all()):
            packed = gathered
        else:
            packed = jnp.where(jnp.asarray(valid)[:, None], gathered,
                               jnp.zeros((), y.dtype))
    return packed, bs_out


def sequence_wise_forward(packed_data, batch_sizes_t, batch_seq_len, w, b,
                          *, use_bf16=False, out_dtype=None):
    hout = w.shape[1]
    # trim=False: keep the lane-padded matmul output and fold the column trim
    # into the repack (avoids an extra output-sized HBM round trip).
    y = seqwise_linear(packed_data, w, b, use_bf16=use_bf16, trim=False,
                       out_dtype=out_dtype)
    return var_to_packed(y, batch_sizes_t, batch_seq_len, hout=hout)


# ---------------------------------------------------------------------------
# Pure-numpy reference of Var_to_packed (for testing the non-identity path)
# ---------------------------------------------------------------------------
def _reference_var_to_packed(y_np, batch_sizes_t, batch_seq_len):
    bst = np.asarray(batch_sizes_t)
    lens = np.asarray(batch_seq_len)
    big_b = int(bst[0])
    t_in = len(bst)
    h = y_np.shape[1]
    padded = np.zeros((t_in, big_b, h), y_np.dtype)
    start = 0
    for t, bt in enumerate(bst):
        padded[t, :bt] = y_np[start:start + bt]
        start += bt
    padded_bf = padded.transpose(1, 0, 2)  # [B, T, H]
    rows = []
    for t in range(int(lens.max())):
        for bb in range(len(lens)):
            if lens[bb] > t:
                rows.append(padded_bf[bb, t])
    return np.stack(rows, 0)


if __name__ == "__main__":
    # --- small deterministic example (same as the PyTorch usage) ---
    H_in, H_out = 32, 32
    batch_seq_len = np.array([8, 6, 5])  # descending lengths, 3 sequences
    T_max = int(batch_seq_len.max())
    batch_sizes_t = np.array([int((batch_seq_len > t).sum()) for t in range(T_max)])
    n_total = int(batch_sizes_t.sum())   # 19 packed rows

    key = jax.random.PRNGKey(0)
    kx, kw, kb = jax.random.split(key, 3)
    x_packed = jax.random.normal(kx, (n_total, H_in), dtype=jnp.float32)
    bound = 1.0 / np.sqrt(H_in)          # nn.Linear default init range
    w = jax.random.uniform(kw, (H_in, H_out), jnp.float32, -bound, bound)
    b = jax.random.uniform(kb, (H_out,), jnp.float32, -bound, bound)

    ref = np.asarray(x_packed @ w + b)

    # 1) main forward (consistent lengths -> identity re-pack fast path)
    out_data, out_batch_sizes = sequence_wise_forward(
        x_packed, batch_sizes_t, batch_seq_len, w, b)
    jax.block_until_ready(out_data)
    assert out_data.shape == (n_total, H_out)
    assert np.allclose(np.asarray(out_data), ref, atol=1e-5)
    assert np.array_equal(np.asarray(out_batch_sizes), batch_sizes_t)

    # 2) inconsistent batch_seq_len -> exercises the gather re-pack path
    batch_seq_len2 = np.array([8, 6, 3])
    out2, bs2 = sequence_wise_forward(
        x_packed, batch_sizes_t, batch_seq_len2, w, b)
    jax.block_until_ready(out2)
    ref2 = _reference_var_to_packed(ref, batch_sizes_t, batch_seq_len2)
    expected_bs2 = np.array([int((batch_seq_len2 > t).sum())
                             for t in range(int(batch_seq_len2.max()))])
    assert np.allclose(np.asarray(out2), ref2, atol=1e-5)
    assert np.array_equal(np.asarray(bs2), expected_bs2)

    # 3) identity-fast-path bug fix: src == arange but shorter than y
    batch_seq_len3 = np.array([3, 3, 3])
    out3, bs3 = sequence_wise_forward(
        x_packed, batch_sizes_t, batch_seq_len3, w, b)
    jax.block_until_ready(out3)
    ref3 = _reference_var_to_packed(ref, batch_sizes_t, batch_seq_len3)
    assert out3.shape == (9, H_out)
    assert np.allclose(np.asarray(out3), ref3, atol=1e-5)
    assert np.array_equal(np.asarray(bs3), np.array([3, 3, 3]))

    # 4) bf16 path (enabled on all generations), looser tolerance
    out_bf, _ = sequence_wise_forward(
        x_packed, batch_sizes_t, batch_seq_len, w, b, use_bf16=True)
    jax.block_until_ready(out_bf)
    assert np.allclose(np.asarray(out_bf), ref, rtol=5e-2, atol=5e-2)

    # 5) larger shape exercising balanced M tiling + weight-resident fast path
    n2, hin2, hout2 = 600, 2048, 384
    k2x, k2w, k2b = jax.random.split(jax.random.PRNGKey(1), 3)
    x2 = jax.random.normal(k2x, (n2, hin2), dtype=jnp.float32)
    w2 = jax.random.normal(k2w, (hin2, hout2), dtype=jnp.float32) / np.sqrt(hin2)
    b2v = jax.random.normal(k2b, (hout2,), dtype=jnp.float32)
    y2 = seqwise_linear(x2, w2, b2v)
    jax.block_until_ready(y2)
    ref_y2 = np.asarray(x2 @ w2 + b2v)
    assert y2.shape == (n2, hout2)
    assert np.allclose(np.asarray(y2), ref_y2, rtol=5e-2, atol=5e-2)

    print("KERNEL_OK")
</pallas_src>

<mosaic_0001>
module attributes {stable_mosaic.version = 11 : i64} {
  func.func @_linear_bias_kernel(%arg0: i32, %arg1: i32, %arg2: memref<24x32xf32, #tpu.memory_space<vmem>>, %arg3: memref<32x128xf32, #tpu.memory_space<vmem>>, %arg4: memref<1x128xf32, #tpu.memory_space<vmem>>, %arg5: memref<24x128xf32, #tpu.memory_space<vmem>>) attributes {dimension_semantics = [#tpu.dimension_semantics<parallel>, #tpu.dimension_semantics<parallel>], iteration_bounds = array<i64: 1, 1>, scalar_prefetch = 0 : i64, scratch_operands = 0 : i64, tpu.core_type = #tpu.core_type<tc>, window_params = [{transform_indices = @transform_0, window_bounds = array<i64: 24, 32>}, {transform_indices = @transform_1, window_bounds = array<i64: 32, 128>}, {transform_indices = @transform_2, window_bounds = array<i64: 1, 128>}, {transform_indices = @transform_3, window_bounds = array<i64: 24, 128>}]} {
    %c0 = arith.constant 0 : index
    %c0_0 = arith.constant 0 : index
    %0 = vector.load %arg2[%c0, %c0_0] : memref<24x32xf32, #tpu.memory_space<vmem>>, vector<24x32xf32>
    %c0_1 = arith.constant 0 : index
    %c0_2 = arith.constant 0 : index
    %1 = vector.load %arg3[%c0_1, %c0_2] : memref<32x128xf32, #tpu.memory_space<vmem>>, vector<32x128xf32>
    %cst = arith.constant dense<0.000000e+00> : vector<24x128xf32>
    %2 = tpu.matmul %0, %1, %cst {dimension_numbers = #tpu.dot_dimension_numbers<[1], [0], [0], [1], [0, 0, 1, 1], [], []>} : vector<24x32xf32>, vector<32x128xf32>, vector<24x128xf32> -> vector<24x128xf32>
    %c0_3 = arith.constant 0 : index
    %c0_4 = arith.constant 0 : index
    %3 = vector.load %arg4[%c0_3, %c0_4] : memref<1x128xf32, #tpu.memory_space<vmem>>, vector<1x128xf32>
    %4 = vector.broadcast %3 : vector<1x128xf32> to vector<24x128xf32>
    %5 = arith.addf %2, %4 : vector<24x128xf32>
    %c0_5 = arith.constant 0 : index
    %c0_6 = arith.constant 0 : index
    %6 = vector.load %arg5[%c0_5, %c0_6] : memref<24x128xf32, #tpu.memory_space<vmem>>, vector<24x128xf32>
    tpu.vector_store %arg5[%c0_5, %c0_6], %5 {strides = array<i32>} : memref<24x128xf32, #tpu.memory_space<vmem>>, vector<24x128xf32>,
    return
  }
  func.func @transform_0(%arg0: i32, %arg1: i32) -> (i32, i32) {
    %c0_i32 = arith.constant 0 : i32
    %c0_i32_0 = arith.constant 0 : i32
    return %arg0, %c0_i32 : i32, i32
  }
  func.func @transform_1(%arg0: i32, %arg1: i32) -> (i32, i32) {
    %c0_i32 = arith.constant 0 : i32
    %c0_i32_0 = arith.constant 0 : i32
    return %c0_i32, %arg1 : i32, i32
  }
  func.func @transform_2(%arg0: i32, %arg1: i32) -> (i32, i32) {
    %c0_i32 = arith.constant 0 : i32
    %c0_i32_0 = arith.constant 0 : i32
    return %c0_i32, %arg1 : i32, i32
  }
  func.func @transform_3(%arg0: i32, %arg1: i32) -> (i32, i32) {
    %c0_i32 = arith.constant 0 : i32
    return %arg0, %arg1 : i32, i32
  }
}

</mosaic_0001>

<llo_original>
// kernel: tpu_custom_call.1
$region0: #{tpu_custom_call.1}
  #allocation0 [shape = 'u32[]', space=smem, size = 0x4, offset = 0x4, fixed_abs, tag = 'smem constant byte address 0x4 - core index']
  #allocation1 [shape = 'u32[72,128]{1,0:T(1,128)}', space=vmem, size = 0x9000, scoped, tag = 'internal scratch']
  %s0 = inlined_call_operand.hbm [shape: f32[19,32], index: 0, kind: input, shape index: {}]
  %s1 = inlined_call_operand.hbm [shape: f32[32,128], index: 1, kind: input, shape index: {}]
  %s2 = inlined_call_operand.vmem [shape: f32[1,128], index: 2, kind: input, shape index: {}]
  %s3 = inlined_call_operand.hbm [shape: f32[19,128], index: 3, kind: output, shape index: {}]
  %s4 = sld [smem:[#allocation0]]
  $region30: #{tpu_custom_call.1} parent=0
    _
  %s6 = ssub.s32 1, %s4
  %s7 = scalar_select 0, %s6, %s4
  $region1: #{tpu_custom_call.1} parent=0
    #allocation2 [shape = 'u8[12288]{0}', space=vmem, size = 0x3000, scoped, tag = 'input window, operand 0, single buffered']
    #allocation3 [shape = 's32[1]{0}', space=sflag, size = 0x4, scoped, tag = 'scoped memory for tpu_custom_call.1']
    #allocation4 [shape = 's32[1]{0}', space=sflag, size = 0x4, scoped, tag = 'scoped memory for tpu_custom_call.1']
    #allocation5 [shape = 'u8[16384]{0}', space=vmem, size = 0x4000, scoped, tag = 'input window, operand 1, single buffered']
    #allocation6 [shape = 's32[1]{0}', space=sflag, size = 0x4, scoped, tag = 'scoped memory for tpu_custom_call.1']
    #allocation7 [shape = 'u8[12288]{0}', space=vmem, size = 0x3000, scoped, tag = 'output window, operand 0, single buffered']
    %8 = vsyncpa [#allocation3], 0
    %9 = vsyncpa [#allocation6], 0
    %10 = vsyncpa [#allocation4], 0
    // Predicated region
    $region2: #{tpu_custom_call.1} parent=1 // pred_check
      _
    $region3: #{tpu_custom_call.1} parent=1 // pred_check_branch
      %12 = sbr.rel (0) target = $region5
    $region4: #{tpu_custom_call.1} parent=1 // pred_region
      %14 = vsyncadd [#allocation3], 0
      %s15 = sshll.u32 %s0, 4
      %s16 = int_to_ptr.hbm [resolvable:$true] %s15
      %s17 = sshll.u32 [#allocation2], 4
      %s18 = int_to_ptr.vmem [resolvable:$true] %s17
      %23 = dma.hbm_to_vmem [thread:$0]  %s16, 384, %s18, [#allocation3], 128, 128, 8
    $region5: #{tpu_custom_call.1} parent=1 // pred_fallthru
      _
    // Predicated region
    $region6: #{tpu_custom_call.1} parent=1 // pred_check
      _
    $region7: #{tpu_custom_call.1} parent=1 // pred_check_branch
      %25 = sbr.rel (0) target = $region9
    $region8: #{tpu_custom_call.1} parent=1 // pred_region
      %27 = vsyncadd [#allocation6], 0
      %s28 = sshll.u32 %s1, 4
      %s29 = int_to_ptr.hbm [resolvable:$true] %s28
      %s30 = sshll.u32 [#allocation5], 4
      %s31 = int_to_ptr.vmem [resolvable:$true] %s30
      %36 = dma.hbm_to_vmem [thread:$0]  %s29, 512, %s31, [#allocation6], 128, 128, 8
    $region9: #{tpu_custom_call.1} parent=1 // pred_fallthru
      _
    // Predicated region
    $region10: #{tpu_custom_call.1} parent=1 // pred_check
      _
    $region11: #{tpu_custom_call.1} parent=1 // pred_check_branch
      %38 = sbr.rel (0) target = $region13
    $region12: #{tpu_custom_call.1} parent=1 // pred_region
      _
    $region13: #{tpu_custom_call.1} parent=1 // pred_fallthru
      _
    // Predicated region
    $region14: #{tpu_custom_call.1} parent=1 // pred_check
      _
    $region15: #{tpu_custom_call.1} parent=1 // pred_check_branch
      %40 = sbr.rel (0) target = $region17
    $region16: #{tpu_custom_call.1} parent=1 // pred_region
      %42 = dma.done [#allocation3], 384
    $region17: #{tpu_custom_call.1} parent=1 // pred_fallthru
      _
    // Predicated region
    $region18: #{tpu_custom_call.1} parent=1 // pred_check
      _
    $region19: #{tpu_custom_call.1} parent=1 // pred_check_branch
      %44 = sbr.rel (0) target = $region21
    $region20: #{tpu_custom_call.1} parent=1 // pred_region
      %46 = dma.done [#allocation6], 512
    $region21: #{tpu_custom_call.1} parent=1 // pred_fallthru
      _
    %v47 = vld [vmem:[#allocation2] sm:$0xff]
    %v48 = vld [vmem:[#allocation2 + $0x8] sm:$0xff]
    %v49 = vld [vmem:[#allocation2 + $0x10] sm:$0xff]
    %v50 = vld [vmem:[#allocation5] sm:$0xff]
    %v51 = vld [vmem:[#allocation5 + $0x8] sm:$0xff]
    %v52 = vld [vmem:[#allocation5 + $0x10] sm:$0xff]
    %v53 = vld [vmem:[#allocation5 + $0x18] sm:$0xff]
    %v54 = vld [vmem:[%s2] sm:$0x1]
    %v56 = vperm.slane %v54, 0
    %vm58 = vcmask 261120
    %v60 = vsel %vm58, %v47, 0
    %v63 = vsel %vm58, %v48, 0
    %v66 = vsel %vm58, %v49, 0
    %68 = vmatpush.msra.mxu0 0.0
    %69 = vmatpush.msra.mxu0 0.0
    %70 = vmatpush.msra.mxu0 0.0
    %71 = vmatpush.msra.mxu0 0.0
    %72 = vmatpush.msra.mxu0 0.0
    %73 = vmatpush.msra.mxu0 0.0
    %74 = vmatpush.msra.mxu0 0.0
    %75 = vmatpush.msra.mxu0 0.0
    %76 = vmatpush.msra.mxu0 0.0
    %77 = vmatpush.msra.mxu0 0.0
    %78 = vmatpush.msra.mxu0 0.0
    %79 = vmatpush.msra.mxu0 0.0
    %80 = vmatpush.msra.mxu0 %v53
    %81 = vmatpush.msra.mxu0 %v52
    %82 = vmatpush.msra.mxu0 %v51
    %83 = vmatpush.msra.mxu0 %v50
    %84 = vmatmul.f32.gmra.mxu0 %v60
    %v85 = vpop.f32.mrf.mxu0
    %v86 = vadd.f32 %v56, %v85
    %87 = vmatmul.f32.gmra.mxu0 %v63
    %v88 = vpop.f32.mrf.mxu0
    %v89 = vadd.f32 %v56, %v88
    %90 = vmatmul.f32.gmra.mxu0 %v66
    %v91 = vpop.f32.mrf.mxu0
    %v92 = vadd.f32 %v56, %v91
    %93 = vdwg.mxu0
    %94 = vst [vmem:[#allocation7] sm:$0xff] %v86
    %95 = vst [vmem:[#allocation7 + $0x8] sm:$0xff] %v89
    %96 = vst [vmem:[#allocation7 + $0x10] sm:$0xff] %v92
    // Predicated region
    $region22: #{tpu_custom_call.1} parent=1 // pred_check
      _
    $region23: #{tpu_custom_call.1} parent=1 // pred_check_branch
      %98 = sbr.rel (0) target = $region25
    $region24: #{tpu_custom_call.1} parent=1 // pred_region
      %100 = vsyncadd [#allocation4], 0
      %s101 = sshll.u32 [#allocation7], 4
      %s102 = int_to_ptr.vmem [resolvable:$true] %s101
      %s103 = sshll.u32 %s3, 4
      %s104 = int_to_ptr.hbm [resolvable:$true] %s103
      %109 = dma.vmem_to_hbm [thread:$0]  %s102, 384, %s104, [#allocation4], 128, 128, 8
    $region25: #{tpu_custom_call.1} parent=1 // pred_fallthru
      _
    // Predicated region
    $region26: #{tpu_custom_call.1} parent=1 // pred_check
      _
    $region27: #{tpu_custom_call.1} parent=1 // pred_check_branch
      %111 = sbr.rel (0) target = $region29
    $region28: #{tpu_custom_call.1} parent=1 // pred_region
      %113 = dma.done [#allocation4], 384
    $region29: #{tpu_custom_call.1} parent=1 // pred_fallthru
      _
    %114 = vsyncpa [#allocation3], 1
    %115 = vsyncpa [#allocation6], 1
    %116 = vsyncpa [#allocation4], 1

</llo_original>
